<compile_context>
chip_gen: v5e
topology: v5e:2x2
jax: 0.10.0
libtpu: 0.0.40
codegen_flags: <defaults>
</compile_context>

<pallas_src>
import functools

import jax
import jax.numpy as jnp
from jax.experimental import pallas as pl
from jax.experimental.pallas import tpu as pltpu


def _se_kernel(x_ref, w1t_ref, b1_ref, w2t_ref, b2_ref, o_ref, *, inv_hw):
    # x_ref block: (Nb, C, HWp); weights/biases are full, VMEM-resident arrays.
    x = x_ref[...]

    # --- squeeze: spatial sum (zero padding is inert) / true HW, in f32 ---
    s = jnp.sum(x.astype(jnp.float32), axis=-1) * inv_hw            # (Nb, C)

    # --- excitation: batched over the Nb in-block batch elements, f32 ---
    h = jnp.dot(s, w1t_ref[...],
                preferred_element_type=jnp.float32) + b1_ref[...]   # (Nb, Cr)
    h = jnp.maximum(h, 0.0)
    g = jnp.dot(h, w2t_ref[...],
                preferred_element_type=jnp.float32) + b2_ref[...]   # (Nb, C)
    g = jax.nn.sigmoid(g)

    # --- scale: per-(n, c) gate broadcast over spatial lanes, in x's dtype ---
    o_ref[...] = (x * g.astype(x.dtype)[:, :, None]).astype(o_ref.dtype)


def _pick_batch_block(n, per_batch_bytes, target_bytes):
    """Batch elements per block: fill ~target_bytes, partial last block OK."""
    nb = max(1, min(n, target_bytes // max(per_batch_bytes, 1)))
    # If the whole batch fits in one block, split once so v7x's two TCs both
    # get work -- but only if each half stays a >=1 MiB DMA (else keep grid=1;
    # on single-TC v5e/v6e extra steps are pure overhead anyway).
    if nb == n and n >= 2:
        half = pl.cdiv(n, 2)
        if half * per_batch_bytes >= (1 << 20):
            nb = half
    return int(nb)


def squeeze_and_excitation(x_nchw, w1, b1, w2, b2, *, target_block_bytes=4 << 20):
    """x_nchw: (N, C, H, W).  w1: (Cr, C), b1: (Cr,), w2: (C, Cr), b2: (C,)
    (PyTorch nn.Linear convention: y = x @ W.T + b)."""
    N, C, H, W = x_nchw.shape
    Cr = w1.shape[0]
    HW = H * W
    x = x_nchw.reshape(N, C, HW)          # contiguous reshape, no data movement

    # Lane-dense last dim: pad HW up to a multiple of 128 with zeros so stores
    # are unmasked full-lane vsts.  The kernel divides by the true HW.
    HWp = ((HW + 127) // 128) * 128
    if HWp != HW:
        x = jnp.pad(x, ((0, 0), (0, 0), (0, HWp - HW)))

    # Pre-transpose params once so the in-kernel dots contract over lanes.
    w1t = jnp.asarray(w1, jnp.float32).T            # (C, Cr)
    b1r = jnp.asarray(b1, jnp.float32).reshape(1, Cr)
    w2t = jnp.asarray(w2, jnp.float32).T            # (Cr, C)
    b2r = jnp.asarray(b2, jnp.float32).reshape(1, C)

    itemsize = x.dtype.itemsize
    per_batch_bytes = C * HWp * itemsize
    nb = _pick_batch_block(N, per_batch_bytes, target_block_bytes)
    grid = (pl.cdiv(N, nb),)

    block_bytes = nb * per_batch_bytes
    block_f32_bytes = nb * C * HWp * 4
    weight_bytes = 4 * (w1t.size + b1r.size + w2t.size + b2r.size)
    # 2x double-buffered input blocks + 2x output blocks + ~2 blocks of f32
    # in-kernel temporaries + resident weights + slack.  Capped at 64 MiB
    # (v7x physical VMEM); larger per-batch planes need the two-pass fallback.
    vmem_limit = 4 * block_bytes + 2 * block_f32_bytes + 2 * weight_bytes + (4 << 20)
    vmem_limit = int(min(max(vmem_limit, 16 << 20), 64 << 20))
    # TODO(synk): two-pass fallback (gate kernel + HW-tiled scale kernel) when
    # a single batch element's (C, HW) plane approaches the VMEM limit.

    kernel = functools.partial(_se_kernel, inv_hw=float(1.0 / HW))

    out = pl.pallas_call(
        kernel,
        out_shape=jax.ShapeDtypeStruct((N, C, HWp), x.dtype),
        grid_spec=pltpu.PrefetchScalarGridSpec(
            num_scalar_prefetch=0,
            grid=grid,
            in_specs=[
                pl.BlockSpec((nb, C, HWp), lambda n: (n, 0, 0)),  # x: Nb batches/step
                pl.BlockSpec((C, Cr), lambda n: (0, 0)),          # W1^T (resident)
                pl.BlockSpec((1, Cr), lambda n: (0, 0)),          # b1
                pl.BlockSpec((Cr, C), lambda n: (0, 0)),          # W2^T (resident)
                pl.BlockSpec((1, C), lambda n: (0, 0)),           # b2
            ],
            out_specs=pl.BlockSpec((nb, C, HWp), lambda n: (n, 0, 0)),
        ),
        compiler_params=pltpu.CompilerParams(
            dimension_semantics=("parallel",),
            vmem_limit_bytes=vmem_limit,
        ),
    )(x, w1t, b1r, w2t, b2r)

    if HWp != HW:
        out = out[:, :, :HW]
    return out.reshape(N, C, H, W)


def _reference(x, w1, b1, w2, b2):
    s = jnp.mean(x, axis=(2, 3))                       # (N, C)
    s = jnp.maximum(s @ w1.T + b1, 0.0)                # (N, Cr)
    s = jax.nn.sigmoid(s @ w2.T + b2)                  # (N, C)
    return x * s[:, :, None, None]


if __name__ == "__main__":
    def run_case(N, C, H, W, r, key, **kw):
        Cr = C // r
        kx, k1, k2, k3, k4 = jax.random.split(key, 5)
        x = jax.random.normal(kx, (N, C, H, W), dtype=jnp.float32)
        # Deterministic synthetic parameters (PyTorch nn.Linear weight shapes).
        w1 = jax.random.normal(k1, (Cr, C), dtype=jnp.float32) * (1.0 / jnp.sqrt(C))
        b1 = jax.random.normal(k2, (Cr,), dtype=jnp.float32) * 0.01
        w2 = jax.random.normal(k3, (C, Cr), dtype=jnp.float32) * (1.0 / jnp.sqrt(Cr))
        b2 = jax.random.normal(k4, (C,), dtype=jnp.float32) * 0.01

        y = jax.block_until_ready(squeeze_and_excitation(x, w1, b1, w2, b2, **kw))
        y_ref = _reference(x, w1, b1, w2, b2)
        assert y.shape == (N, C, H, W)
        assert jnp.allclose(y, y_ref, atol=1e-4, rtol=1e-4), "mismatch vs reference"

    key = jax.random.PRNGKey(0)
    k_a, k_b = jax.random.split(key)

    # Case 1: lane-dense spatial extent (HW = 256), whole batch in one block.
    run_case(8, 64, 16, 16, 16, k_a)

    # Case 2: ResNet-style 7x7 (HW = 49 -> zero-padded to 128) with N = 3 and
    # a small block target, exercising the padded-lane path and a partial
    # (masked) last batch block.
    run_case(3, 32, 7, 7, 16, k_b, target_block_bytes=1 << 15)

    print("KERNEL_OK")
</pallas_src>

<mosaic_0001>
module attributes {stable_mosaic.version = 11 : i64} {
  func.func @_se_kernel(%arg0: i32, %arg1: memref<8x64x256xf32, #tpu.memory_space<vmem>>, %arg2: memref<64x4xf32, #tpu.memory_space<vmem>>, %arg3: memref<1x4xf32, #tpu.memory_space<vmem>>, %arg4: memref<4x64xf32, #tpu.memory_space<vmem>>, %arg5: memref<1x64xf32, #tpu.memory_space<vmem>>, %arg6: memref<8x64x256xf32, #tpu.memory_space<vmem>>) attributes {dimension_semantics = [#tpu.dimension_semantics<parallel>], iteration_bounds = array<i64: 1>, scalar_prefetch = 0 : i64, scratch_operands = 0 : i64, tpu.core_type = #tpu.core_type<tc>, window_params = [{transform_indices = @transform_0, window_bounds = array<i64: 8, 64, 256>}, {pipeline_mode = #tpu.pipeline_mode<synchronous>, transform_indices = @transform_1, window_bounds = array<i64: 64, 4>}, {pipeline_mode = #tpu.pipeline_mode<synchronous>, transform_indices = @transform_2, window_bounds = array<i64: 1, 4>}, {pipeline_mode = #tpu.pipeline_mode<synchronous>, transform_indices = @transform_3, window_bounds = array<i64: 4, 64>}, {pipeline_mode = #tpu.pipeline_mode<synchronous>, transform_indices = @transform_4, window_bounds = array<i64: 1, 64>}, {transform_indices = @transform_5, window_bounds = array<i64: 8, 64, 256>}]} {
    %c0 = arith.constant 0 : index
    %c0_0 = arith.constant 0 : index
    %c0_1 = arith.constant 0 : index
    %0 = vector.load %arg1[%c0, %c0_0, %c0_1] : memref<8x64x256xf32, #tpu.memory_space<vmem>>, vector<8x64x256xf32>
    %cst = arith.constant dense<0.000000e+00> : vector<8x64xf32>
    %1 = vector.multi_reduction <add>, %0, %cst [2] : vector<8x64x256xf32> to vector<8x64xf32>
    %cst_2 = arith.constant 3.906250e-03 : f32
    %2 = vector.broadcast %cst_2 : f32 to vector<8x64xf32>
    %3 = arith.mulf %1, %2 : vector<8x64xf32>
    %c0_3 = arith.constant 0 : index
    %c0_4 = arith.constant 0 : index
    %4 = vector.load %arg2[%c0_3, %c0_4] : memref<64x4xf32, #tpu.memory_space<vmem>>, vector<64x4xf32>
    %cst_5 = arith.constant dense<0.000000e+00> : vector<8x4xf32>
    %5 = tpu.matmul %3, %4, %cst_5 {dimension_numbers = #tpu.dot_dimension_numbers<[1], [0], [0], [1], [0, 0, 1, 1], [], []>} : vector<8x64xf32>, vector<64x4xf32>, vector<8x4xf32> -> vector<8x4xf32>
    %c0_6 = arith.constant 0 : index
    %c0_7 = arith.constant 0 : index
    %6 = vector.load %arg3[%c0_6, %c0_7] : memref<1x4xf32, #tpu.memory_space<vmem>>, vector<1x4xf32>
    %7 = vector.broadcast %6 : vector<1x4xf32> to vector<8x4xf32>
    %8 = arith.addf %5, %7 : vector<8x4xf32>
    %cst_8 = arith.constant 0.000000e+00 : f32
    %9 = vector.broadcast %cst_8 : f32 to vector<8x4xf32>
    %10 = arith.maximumf %8, %9 : vector<8x4xf32>
    %c0_9 = arith.constant 0 : index
    %c0_10 = arith.constant 0 : index
    %11 = vector.load %arg4[%c0_9, %c0_10] : memref<4x64xf32, #tpu.memory_space<vmem>>, vector<4x64xf32>
    %cst_11 = arith.constant dense<0.000000e+00> : vector<8x64xf32>
    %12 = tpu.matmul %10, %11, %cst_11 {dimension_numbers = #tpu.dot_dimension_numbers<[1], [0], [0], [1], [0, 0, 1, 1], [], []>} : vector<8x4xf32>, vector<4x64xf32>, vector<8x64xf32> -> vector<8x64xf32>
    %c0_12 = arith.constant 0 : index
    %c0_13 = arith.constant 0 : index
    %13 = vector.load %arg5[%c0_12, %c0_13] : memref<1x64xf32, #tpu.memory_space<vmem>>, vector<1x64xf32>
    %14 = vector.broadcast %13 : vector<1x64xf32> to vector<8x64xf32>
    %15 = arith.addf %12, %14 : vector<8x64xf32>
    %16 = arith.negf %15 : vector<8x64xf32>
    %17 = math.exp %16 : vector<8x64xf32>
    %cst_14 = arith.constant 1.000000e+00 : f32
    %18 = vector.broadcast %cst_14 : f32 to vector<8x64xf32>
    %19 = arith.addf %18, %17 : vector<8x64xf32>
    %20 = arith.divf %18, %19 : vector<8x64xf32>
    %21 = vector.shape_cast %20 : vector<8x64xf32> to vector<8x64x1xf32>
    %22 = vector.broadcast %21 : vector<8x64x1xf32> to vector<8x64x256xf32>
    %23 = arith.mulf %0, %22 : vector<8x64x256xf32>
    %c0_15 = arith.constant 0 : index
    %c0_16 = arith.constant 0 : index
    %c0_17 = arith.constant 0 : index
    %24 = vector.load %arg6[%c0_15, %c0_16, %c0_17] : memref<8x64x256xf32, #tpu.memory_space<vmem>>, vector<8x64x256xf32>
    tpu.vector_store %arg6[%c0_15, %c0_16, %c0_17], %23 {strides = array<i32>} : memref<8x64x256xf32, #tpu.memory_space<vmem>>, vector<8x64x256xf32>,
    return
  }
  func.func @transform_0(%arg0: i32) -> (i32, i32, i32) {
    %c0_i32 = arith.constant 0 : i32
    %c0_i32_0 = arith.constant 0 : i32
    %c0_i32_1 = arith.constant 0 : i32
    return %arg0, %c0_i32, %c0_i32_0 : i32, i32, i32
  }
  func.func @transform_1(%arg0: i32) -> (i32, i32) {
    %c0_i32 = arith.constant 0 : i32
    %c0_i32_0 = arith.constant 0 : i32
    %c0_i32_1 = arith.constant 0 : i32
    return %c0_i32, %c0_i32_0 : i32, i32
  }
  func.func @transform_2(%arg0: i32) -> (i32, i32) {
    %c0_i32 = arith.constant 0 : i32
    %c0_i32_0 = arith.constant 0 : i32
    %c0_i32_1 = arith.constant 0 : i32
    return %c0_i32, %c0_i32_0 : i32, i32
  }
  func.func @transform_3(%arg0: i32) -> (i32, i32) {
    %c0_i32 = arith.constant 0 : i32
    %c0_i32_0 = arith.constant 0 : i32
    %c0_i32_1 = arith.constant 0 : i32
    return %c0_i32, %c0_i32_0 : i32, i32
  }
  func.func @transform_4(%arg0: i32) -> (i32, i32) {
    %c0_i32 = arith.constant 0 : i32
    %c0_i32_0 = arith.constant 0 : i32
    %c0_i32_1 = arith.constant 0 : i32
    return %c0_i32, %c0_i32_0 : i32, i32
  }
  func.func @transform_5(%arg0: i32) -> (i32, i32, i32) {
    %c0_i32 = arith.constant 0 : i32
    %c0_i32_0 = arith.constant 0 : i32
    %c0_i32_1 = arith.constant 0 : i32
    return %arg0, %c0_i32, %c0_i32_0 : i32, i32, i32
  }
}

</mosaic_0001>

<llo_original>
// kernel: tpu_custom_call.1
$region0: #{tpu_custom_call.1}
  #allocation0 [shape = 'u32[]', space=smem, size = 0x4, offset = 0x4, fixed_abs, tag = 'smem constant byte address 0x4 - core index']
  #allocation1 [shape = 'u32[72,128]{1,0:T(1,128)}', space=vmem, size = 0x9000, scoped, tag = 'internal scratch']
  %s0 = inlined_call_operand.hbm [shape: f32[8,64,256], index: 0, kind: input, shape index: {}]
  %s1 = inlined_call_operand.vmem [shape: f32[64,4], index: 1, kind: input, shape index: {}]
  %s2 = inlined_call_operand.vmem [shape: f32[1,4], index: 2, kind: input, shape index: {}]
  %s3 = inlined_call_operand.vmem [shape: f32[4,64], index: 3, kind: input, shape index: {}]
  %s4 = inlined_call_operand.vmem [shape: f32[1,64], index: 4, kind: input, shape index: {}]
  %s5 = inlined_call_operand.hbm [shape: f32[8,64,256], index: 5, kind: output, shape index: {}]
  %s6 = sld [smem:[#allocation0]]
  $region34: #{tpu_custom_call.1} parent=0
    _
  %s8 = ssub.s32 1, %s6
  %s9 = scalar_select 0, %s8, %s6
  $region1: #{tpu_custom_call.1} parent=0
    #allocation2 [shape = 'u8[524288]{0}', space=vmem, size = 0x80000, scoped, tag = 'input window, operand 0, single buffered']
    #allocation3 [shape = 's32[1]{0}', space=sflag, size = 0x4, scoped, tag = 'scoped memory for tpu_custom_call.1']
    #allocation4 [shape = 's32[1]{0}', space=sflag, size = 0x4, scoped, tag = 'scoped memory for tpu_custom_call.1']
    #allocation5 [shape = 'u8[524288]{0}', space=vmem, size = 0x80000, scoped, tag = 'output window, operand 0, single buffered']
    %10 = vsyncpa [#allocation3], 0
    %11 = vsyncpa [#allocation4], 0
    // Predicated region
    $region2: #{tpu_custom_call.1} parent=1 // pred_check
      _
    $region3: #{tpu_custom_call.1} parent=1 // pred_check_branch
      %13 = sbr.rel (0) target = $region5
    $region4: #{tpu_custom_call.1} parent=1 // pred_region
      %15 = vsyncadd [#allocation3], 0
      %s16 = sshll.u32 %s0, 4
      %s17 = int_to_ptr.hbm [resolvable:$true] %s16
      %s18 = sshll.u32 [#allocation2], 4
      %s19 = int_to_ptr.vmem [resolvable:$true] %s18
      %24 = dma.hbm_to_vmem [thread:$0]  %s17, 16384, %s19, [#allocation3], 256, 256, 16
    $region5: #{tpu_custom_call.1} parent=1 // pred_fallthru
      _
    // Predicated region
    $region6: #{tpu_custom_call.1} parent=1 // pred_check
      _
    $region7: #{tpu_custom_call.1} parent=1 // pred_check_branch
      %26 = sbr.rel (0) target = $region9
    $region8: #{tpu_custom_call.1} parent=1 // pred_region
      _
    $region9: #{tpu_custom_call.1} parent=1 // pred_fallthru
      _
    // Predicated region
    $region10: #{tpu_custom_call.1} parent=1 // pred_check
      _
    $region11: #{tpu_custom_call.1} parent=1 // pred_check_branch
      %28 = sbr.rel (0) target = $region13
    $region12: #{tpu_custom_call.1} parent=1 // pred_region
      _
    $region13: #{tpu_custom_call.1} parent=1 // pred_fallthru
      _
    // Predicated region
    $region14: #{tpu_custom_call.1} parent=1 // pred_check
      _
    $region15: #{tpu_custom_call.1} parent=1 // pred_check_branch
      %30 = sbr.rel (0) target = $region17
    $region16: #{tpu_custom_call.1} parent=1 // pred_region
      _
    $region17: #{tpu_custom_call.1} parent=1 // pred_fallthru
      _
    // Predicated region
    $region18: #{tpu_custom_call.1} parent=1 // pred_check
      _
    $region19: #{tpu_custom_call.1} parent=1 // pred_check_branch
      %32 = sbr.rel (0) target = $region21
    $region20: #{tpu_custom_call.1} parent=1 // pred_region
      _
    $region21: #{tpu_custom_call.1} parent=1 // pred_fallthru
      _
    // Predicated region
    $region22: #{tpu_custom_call.1} parent=1 // pred_check
      _
    $region23: #{tpu_custom_call.1} parent=1 // pred_check_branch
      %34 = sbr.rel (0) target = $region25
    $region24: #{tpu_custom_call.1} parent=1 // pred_region
      %36 = dma.done [#allocation3], 16384
    $region25: #{tpu_custom_call.1} parent=1 // pred_fallthru
      _
    %v37 = vld [vmem:[#allocation2] sm:$0xff]
    %v38 = vld [vmem:[#allocation2 + $0x8] sm:$0xff]
    %v39 = vld [vmem:[#allocation2 + $0x10] sm:$0xff]
    %v40 = vld [vmem:[#allocation2 + $0x18] sm:$0xff]
    %v41 = vld [vmem:[#allocation2 + $0x20] sm:$0xff]
    %v42 = vld [vmem:[#allocation2 + $0x28] sm:$0xff]
    %v43 = vld [vmem:[#allocation2 + $0x30] sm:$0xff]
    %v44 = vld [vmem:[#allocation2 + $0x38] sm:$0xff]
    %v45 = vld [vmem:[#allocation2 + $0x40] sm:$0xff]
    %v46 = vld [vmem:[#allocation2 + $0x48] sm:$0xff]
    %v47 = vld [vmem:[#allocation2 + $0x50] sm:$0xff]
    %v48 = vld [vmem:[#allocation2 + $0x58] sm:$0xff]
    %v49 = vld [vmem:[#allocation2 + $0x60] sm:$0xff]
    %v50 = vld [vmem:[#allocation2 + $0x68] sm:$0xff]
    %v51 = vld [vmem:[#allocation2 + $0x70] sm:$0xff]
    %v52 = vld [vmem:[#allocation2 + $0x78] sm:$0xff]
    %v53 = vld [vmem:[#allocation2 + $0x80] sm:$0xff]
    %v54 = vld [vmem:[#allocation2 + $0x88] sm:$0xff]
    %v55 = vld [vmem:[#allocation2 + $0x90] sm:$0xff]
    %v56 = vld [vmem:[#allocation2 + $0x98] sm:$0xff]
    %v57 = vld [vmem:[#allocation2 + $0xa0] sm:$0xff]
    %v58 = vld [vmem:[#allocation2 + $0xa8] sm:$0xff]
    %v59 = vld [vmem:[#allocation2 + $0xb0] sm:$0xff]
    %v60 = vld [vmem:[#allocation2 + $0xb8] sm:$0xff]
    %v61 = vld [vmem:[#allocation2 + $0xc0] sm:$0xff]
    %v62 = vld [vmem:[#allocation2 + $0xc8] sm:$0xff]
    %v63 = vld [vmem:[#allocation2 + $0xd0] sm:$0xff]
    %v64 = vld [vmem:[#allocation2 + $0xd8] sm:$0xff]
    %v65 = vld [vmem:[#allocation2 + $0xe0] sm:$0xff]
    %v66 = vld [vmem:[#allocation2 + $0xe8] sm:$0xff]
    %v67 = vld [vmem:[#allocation2 + $0xf0] sm:$0xff]
    %v68 = vld [vmem:[#allocation2 + $0xf8] sm:$0xff]
    %v69 = vld [vmem:[#allocation2 + $0x100] sm:$0xff]
    %v70 = vld [vmem:[#allocation2 + $0x108] sm:$0xff]
    %v71 = vld [vmem:[#allocation2 + $0x110] sm:$0xff]
    %v72 = vld [vmem:[#allocation2 + $0x118] sm:$0xff]
    %v73 = vld [vmem:[#allocation2 + $0x120] sm:$0xff]
    %v74 = vld [vmem:[#allocation2 + $0x128] sm:$0xff]
    %v75 = vld [vmem:[#allocation2 + $0x130] sm:$0xff]
    %v76 = vld [vmem:[#allocation2 + $0x138] sm:$0xff]
    %v77 = vld [vmem:[#allocation2 + $0x140] sm:$0xff]
    %v78 = vld [vmem:[#allocation2 + $0x148] sm:$0xff]
    %v79 = vld [vmem:[#allocation2 + $0x150] sm:$0xff]
    %v80 = vld [vmem:[#allocation2 + $0x158] sm:$0xff]
    %v81 = vld [vmem:[#allocation2 + $0x160] sm:$0xff]
    %v82 = vld [vmem:[#allocation2 + $0x168] sm:$0xff]
    %v83 = vld [vmem:[#allocation2 + $0x170] sm:$0xff]
    %v84 = vld [vmem:[#allocation2 + $0x178] sm:$0xff]
    %v85 = vld [vmem:[#allocation2 + $0x180] sm:$0xff]
    %v86 = vld [vmem:[#allocation2 + $0x188] sm:$0xff]
    %v87 = vld [vmem:[#allocation2 + $0x190] sm:$0xff]
    %v88 = vld [vmem:[#allocation2 + $0x198] sm:$0xff]
    %v89 = vld [vmem:[#allocation2 + $0x1a0] sm:$0xff]
    %v90 = vld [vmem:[#allocation2 + $0x1a8] sm:$0xff]
    %v91 = vld [vmem:[#allocation2 + $0x1b0] sm:$0xff]
    %v92 = vld [vmem:[#allocation2 + $0x1b8] sm:$0xff]
    %v93 = vld [vmem:[#allocation2 + $0x1c0] sm:$0xff]
    %v94 = vld [vmem:[#allocation2 + $0x1c8] sm:$0xff]
    %v95 = vld [vmem:[#allocation2 + $0x1d0] sm:$0xff]
    %v96 = vld [vmem:[#allocation2 + $0x1d8] sm:$0xff]
    %v97 = vld [vmem:[#allocation2 + $0x1e0] sm:$0xff]
    %v98 = vld [vmem:[#allocation2 + $0x1e8] sm:$0xff]
    %v99 = vld [vmem:[#allocation2 + $0x1f0] sm:$0xff]
    %v100 = vld [vmem:[#allocation2 + $0x1f8] sm:$0xff]
    %v101 = vld [vmem:[#allocation2 + $0x200] sm:$0xff]
    %v102 = vld [vmem:[#allocation2 + $0x208] sm:$0xff]
    %v103 = vld [vmem:[#allocation2 + $0x210] sm:$0xff]
    %v104 = vld [vmem:[#allocation2 + $0x218] sm:$0xff]
    %v105 = vld [vmem:[#allocation2 + $0x220] sm:$0xff]
    %v106 = vld [vmem:[#allocation2 + $0x228] sm:$0xff]
    %v107 = vld [vmem:[#allocation2 + $0x230] sm:$0xff]
    %v108 = vld [vmem:[#allocation2 + $0x238] sm:$0xff]
    %v109 = vld [vmem:[#allocation2 + $0x240] sm:$0xff]
    %v110 = vld [vmem:[#allocation2 + $0x248] sm:$0xff]
    %v111 = vld [vmem:[#allocation2 + $0x250] sm:$0xff]
    %v112 = vld [vmem:[#allocation2 + $0x258] sm:$0xff]
    %v113 = vld [vmem:[#allocation2 + $0x260] sm:$0xff]
    %v114 = vld [vmem:[#allocation2 + $0x268] sm:$0xff]
    %v115 = vld [vmem:[#allocation2 + $0x270] sm:$0xff]
    %v116 = vld [vmem:[#allocation2 + $0x278] sm:$0xff]
    %v117 = vld [vmem:[#allocation2 + $0x280] sm:$0xff]
    %v118 = vld [vmem:[#allocation2 + $0x288] sm:$0xff]
    %v119 = vld [vmem:[#allocation2 + $0x290] sm:$0xff]
    %v120 = vld [vmem:[#allocation2 + $0x298] sm:$0xff]
    %v121 = vld [vmem:[#allocation2 + $0x2a0] sm:$0xff]
    %v122 = vld [vmem:[#allocation2 + $0x2a8] sm:$0xff]
    %v123 = vld [vmem:[#allocation2 + $0x2b0] sm:$0xff]
    %v124 = vld [vmem:[#allocation2 + $0x2b8] sm:$0xff]
    %v125 = vld [vmem:[#allocation2 + $0x2c0] sm:$0xff]
    %v126 = vld [vmem:[#allocation2 + $0x2c8] sm:$0xff]
    %v127 = vld [vmem:[#allocation2 + $0x2d0] sm:$0xff]
    %v128 = vld [vmem:[#allocation2 + $0x2d8] sm:$0xff]
    %v129 = vld [vmem:[#allocation2 + $0x2e0] sm:$0xff]
    %v130 = vld [vmem:[#allocation2 + $0x2e8] sm:$0xff]
    %v131 = vld [vmem:[#allocation2 + $0x2f0] sm:$0xff]
    %v132 = vld [vmem:[#allocation2 + $0x2f8] sm:$0xff]
    %v133 = vld [vmem:[#allocation2 + $0x300] sm:$0xff]
    %v134 = vld [vmem:[#allocation2 + $0x308] sm:$0xff]
    %v135 = vld [vmem:[#allocation2 + $0x310] sm:$0xff]
    %v136 = vld [vmem:[#allocation2 + $0x318] sm:$0xff]
    %v137 = vld [vmem:[#allocation2 + $0x320] sm:$0xff]
    %v138 = vld [vmem:[#allocation2 + $0x328] sm:$0xff]
    %v139 = vld [vmem:[#allocation2 + $0x330] sm:$0xff]
    %v140 = vld [vmem:[#allocation2 + $0x338] sm:$0xff]
    %v141 = vld [vmem:[#allocation2 + $0x340] sm:$0xff]
    %v142 = vld [vmem:[#allocation2 + $0x348] sm:$0xff]
    %v143 = vld [vmem:[#allocation2 + $0x350] sm:$0xff]
    %v144 = vld [vmem:[#allocation2 + $0x358] sm:$0xff]
    %v145 = vld [vmem:[#allocation2 + $0x360] sm:$0xff]
    %v146 = vld [vmem:[#allocation2 + $0x368] sm:$0xff]
    %v147 = vld [vmem:[#allocation2 + $0x370] sm:$0xff]
    %v148 = vld [vmem:[#allocation2 + $0x378] sm:$0xff]
    %v149 = vld [vmem:[#allocation2 + $0x380] sm:$0xff]
    %v150 = vld [vmem:[#allocation2 + $0x388] sm:$0xff]
    %v151 = vld [vmem:[#allocation2 + $0x390] sm:$0xff]
    %v152 = vld [vmem:[#allocation2 + $0x398] sm:$0xff]
    %v153 = vld [vmem:[#allocation2 + $0x3a0] sm:$0xff]
    %v154 = vld [vmem:[#allocation2 + $0x3a8] sm:$0xff]
    %v155 = vld [vmem:[#allocation2 + $0x3b0] sm:$0xff]
    %v156 = vld [vmem:[#allocation2 + $0x3b8] sm:$0xff]
    %v157 = vld [vmem:[#allocation2 + $0x3c0] sm:$0xff]
    %v158 = vld [vmem:[#allocation2 + $0x3c8] sm:$0xff]
    %v159 = vld [vmem:[#allocation2 + $0x3d0] sm:$0xff]
    %v160 = vld [vmem:[#allocation2 + $0x3d8] sm:$0xff]
    %v161 = vld [vmem:[#allocation2 + $0x3e0] sm:$0xff]
    %v162 = vld [vmem:[#allocation2 + $0x3e8] sm:$0xff]
    %v163 = vld [vmem:[#allocation2 + $0x3f0] sm:$0xff]
    %v164 = vld [vmem:[#allocation2 + $0x3f8] sm:$0xff]
    %v165 = vadd.f32 %v37, %v38
    %166 = vadd.xlane.f32.xlu0 %v165
    %v167 = vpop.xlane.xlu0 %166
    %v168 = vadd.f32 %v39, %v40
    %169 = vadd.xlane.f32.xlu0 %v168
    %v170 = vpop.xlane.xlu0 %169
    %v171 = vadd.f32 %v41, %v42
    %172 = vadd.xlane.f32.xlu0 %v171
    %v173 = vpop.xlane.xlu0 %172
    %v174 = vadd.f32 %v43, %v44
    %175 = vadd.xlane.f32.xlu0 %v174
    %v176 = vpop.xlane.xlu0 %175
    %v177 = vadd.f32 %v45, %v46
    %178 = vadd.xlane.f32.xlu0 %v177
    %v179 = vpop.xlane.xlu0 %178
    %v180 = vadd.f32 %v47, %v48
    %181 = vadd.xlane.f32.xlu0 %v180
    %v182 = vpop.xlane.xlu0 %181
    %v183 = vadd.f32 %v49, %v50
    %184 = vadd.xlane.f32.xlu0 %v183
    %v185 = vpop.xlane.xlu0 %184
    %v186 = vadd.f32 %v51, %v52
    %187 = vadd.xlane.f32.xlu0 %v186
    %v188 = vpop.xlane.xlu0 %187
    %v189 = vadd.f32 %v53, %v54
    %190 = vadd.xlane.f32.xlu0 %v189
    %v191 = vpop.xlane.xlu0 %190
    %v192 = vadd.f32 %v55, %v56
    %193 = vadd.xlane.f32.xlu0 %v192
    %v194 = vpop.xlane.xlu0 %193
    %v195 = vadd.f32 %v57, %v58
    %196 = vadd.xlane.f32.xlu0 %v195
    %v197 = vpop.xlane.xlu0 %196
    %v198 = vadd.f32 %v59, %v60
    %199 = vadd.xlane.f32.xlu0 %v198
    %v200 = vpop.xlane.xlu0 %199
    %v201 = vadd.f32 %v61, %v62
    %202 = vadd.xlane.f32.xlu0 %v201
    %v203 = vpop.xlane.xlu0 %202
    %v204 = vadd.f32 %v63, %v64
    %205 = vadd.xlane.f32.xlu0 %v204
    %v206 = vpop.xlane.xlu0 %205
    %v207 = vadd.f32 %v65, %v66
    %208 = vadd.xlane.f32.xlu0 %v207
    %v209 = vpop.xlane.xlu0 %208
    %v210 = vadd.f32 %v67, %v68
    %211 = vadd.xlane.f32.xlu0 %v210
    %v212 = vpop.xlane.xlu0 %211
    %v213 = vadd.f32 %v69, %v70
    %214 = vadd.xlane.f32.xlu0 %v213
    %v215 = vpop.xlane.xlu0 %214
    %v216 = vadd.f32 %v71, %v72
    %217 = vadd.xlane.f32.xlu0 %v216
    %v218 = vpop.xlane.xlu0 %217
    %v219 = vadd.f32 %v73, %v74
    %220 = vadd.xlane.f32.xlu0 %v219
    %v221 = vpop.xlane.xlu0 %220
    %v222 = vadd.f32 %v75, %v76
    %223 = vadd.xlane.f32.xlu0 %v222
    %v224 = vpop.xlane.xlu0 %223
    %v225 = vadd.f32 %v77, %v78
    %226 = vadd.xlane.f32.xlu0 %v225
    %v227 = vpop.xlane.xlu0 %226
    %v228 = vadd.f32 %v79, %v80
    %229 = vadd.xlane.f32.xlu0 %v228
    %v230 = vpop.xlane.xlu0 %229
    %v231 = vadd.f32 %v81, %v82
    %232 = vadd.xlane.f32.xlu0 %v231
    %v233 = vpop.xlane.xlu0 %232
    %v234 = vadd.f32 %v83, %v84
    %235 = vadd.xlane.f32.xlu0 %v234
    %v236 = vpop.xlane.xlu0 %235
    %v237 = vadd.f32 %v85, %v86
    %238 = vadd.xlane.f32.xlu0 %v237
    %v239 = vpop.xlane.xlu0 %238
    %v240 = vadd.f32 %v87, %v88
    %241 = vadd.xlane.f32.xlu0 %v240
    %v242 = vpop.xlane.xlu0 %241
    %v243 = vadd.f32 %v89, %v90
    %244 = vadd.xlane.f32.xlu0 %v243
    %v245 = vpop.xlane.xlu0 %244
    %v246 = vadd.f32 %v91, %v92
    %247 = vadd.xlane.f32.xlu0 %v246
    %v248 = vpop.xlane.xlu0 %247
    %v249 = vadd.f32 %v93, %v94
    %250 = vadd.xlane.f32.xlu0 %v249
    %v251 = vpop.xlane.xlu0 %250
    %v252 = vadd.f32 %v95, %v96
    %253 = vadd.xlane.f32.xlu0 %v252
    %v254 = vpop.xlane.xlu0 %253
    %v255 = vadd.f32 %v97, %v98
    %256 = vadd.xlane.f32.xlu0 %v255
    %v257 = vpop.xlane.xlu0 %256
    %v258 = vadd.f32 %v99, %v100
    %259 = vadd.xlane.f32.xlu0 %v258
    %v260 = vpop.xlane.xlu0 %259
    %v261 = vadd.f32 %v101, %v102
    %262 = vadd.xlane.f32.xlu0 %v261
    %v263 = vpop.xlane.xlu0 %262
    %v264 = vadd.f32 %v103, %v104
    %265 = vadd.xlane.f32.xlu0 %v264
    %v266 = vpop.xlane.xlu0 %265
    %v267 = vadd.f32 %v105, %v106
    %268 = vadd.xlane.f32.xlu0 %v267
    %v269 = vpop.xlane.xlu0 %268
    %v270 = vadd.f32 %v107, %v108
    %271 = vadd.xlane.f32.xlu0 %v270
    %v272 = vpop.xlane.xlu0 %271
    %v273 = vadd.f32 %v109, %v110
    %274 = vadd.xlane.f32.xlu0 %v273
    %v275 = vpop.xlane.xlu0 %274
    %v276 = vadd.f32 %v111, %v112
    %277 = vadd.xlane.f32.xlu0 %v276
    %v278 = vpop.xlane.xlu0 %277
    %v279 = vadd.f32 %v113, %v114
    %280 = vadd.xlane.f32.xlu0 %v279
    %v281 = vpop.xlane.xlu0 %280
    %v282 = vadd.f32 %v115, %v116
    %283 = vadd.xlane.f32.xlu0 %v282
    %v284 = vpop.xlane.xlu0 %283
    %v285 = vadd.f32 %v117, %v118
    %286 = vadd.xlane.f32.xlu0 %v285
    %v287 = vpop.xlane.xlu0 %286
    %v288 = vadd.f32 %v119, %v120
    %289 = vadd.xlane.f32.xlu0 %v288
    %v290 = vpop.xlane.xlu0 %289
    %v291 = vadd.f32 %v121, %v122
    %292 = vadd.xlane.f32.xlu0 %v291
    %v293 = vpop.xlane.xlu0 %292
    %v294 = vadd.f32 %v123, %v124
    %295 = vadd.xlane.f32.xlu0 %v294
    %v296 = vpop.xlane.xlu0 %295
    %v297 = vadd.f32 %v125, %v126
    %298 = vadd.xlane.f32.xlu0 %v297
    %v299 = vpop.xlane.xlu0 %298
    %v300 = vadd.f32 %v127, %v128
    %301 = vadd.xlane.f32.xlu0 %v300
    %v302 = vpop.xlane.xlu0 %301
    %v303 = vadd.f32 %v129, %v130
    %304 = vadd.xlane.f32.xlu0 %v303
    %v305 = vpop.xlane.xlu0 %304
    %v306 = vadd.f32 %v131, %v132
    %307 = vadd.xlane.f32.xlu0 %v306
    %v308 = vpop.xlane.xlu0 %307
    %v309 = vadd.f32 %v133, %v134
    %310 = vadd.xlane.f32.xlu0 %v309
    %v311 = vpop.xlane.xlu0 %310
    %v312 = vadd.f32 %v135, %v136
    %313 = vadd.xlane.f32.xlu0 %v312
    %v314 = vpop.xlane.xlu0 %313
    %v315 = vadd.f32 %v137, %v138
    %316 = vadd.xlane.f32.xlu0 %v315
    %v317 = vpop.xlane.xlu0 %316
    %v318 = vadd.f32 %v139, %v140
    %319 = vadd.xlane.f32.xlu0 %v318
    %v320 = vpop.xlane.xlu0 %319
    %v321 = vadd.f32 %v141, %v142
    %322 = vadd.xlane.f32.xlu0 %v321
    %v323 = vpop.xlane.xlu0 %322
    %v324 = vadd.f32 %v143, %v144
    %325 = vadd.xlane.f32.xlu0 %v324
    %v326 = vpop.xlane.xlu0 %325
    %v327 = vadd.f32 %v145, %v146
    %328 = vadd.xlane.f32.xlu0 %v327
    %v329 = vpop.xlane.xlu0 %328
    %v330 = vadd.f32 %v147, %v148
    %331 = vadd.xlane.f32.xlu0 %v330
    %v332 = vpop.xlane.xlu0 %331
    %v333 = vadd.f32 %v149, %v150
    %334 = vadd.xlane.f32.xlu0 %v333
    %v335 = vpop.xlane.xlu0 %334
    %v336 = vadd.f32 %v151, %v152
    %337 = vadd.xlane.f32.xlu0 %v336
    %v338 = vpop.xlane.xlu0 %337
    %v339 = vadd.f32 %v153, %v154
    %340 = vadd.xlane.f32.xlu0 %v339
    %v341 = vpop.xlane.xlu0 %340
    %v342 = vadd.f32 %v155, %v156
    %343 = vadd.xlane.f32.xlu0 %v342
    %v344 = vpop.xlane.xlu0 %343
    %v345 = vadd.f32 %v157, %v158
    %346 = vadd.xlane.f32.xlu0 %v345
    %v347 = vpop.xlane.xlu0 %346
    %v348 = vadd.f32 %v159, %v160
    %349 = vadd.xlane.f32.xlu0 %v348
    %v350 = vpop.xlane.xlu0 %349
    %v351 = vadd.f32 %v161, %v162
    %352 = vadd.xlane.f32.xlu0 %v351
    %v353 = vpop.xlane.xlu0 %352
    %v354 = vadd.f32 %v163, %v164
    %355 = vadd.xlane.f32.xlu0 %v354
    %v356 = vpop.xlane.xlu0 %355
    %v357 = vmul.f32 %v167, 0.00390625
    %v358 = vmul.f32 %v170, 0.00390625
    %v359 = vmul.f32 %v173, 0.00390625
    %v360 = vmul.f32 %v176, 0.00390625
    %v361 = vmul.f32 %v179, 0.00390625
    %v362 = vmul.f32 %v182, 0.00390625
    %v363 = vmul.f32 %v185, 0.00390625
    %v364 = vmul.f32 %v188, 0.00390625
    %v365 = vmul.f32 %v191, 0.00390625
    %v366 = vmul.f32 %v194, 0.00390625
    %v367 = vmul.f32 %v197, 0.00390625
    %v368 = vmul.f32 %v200, 0.00390625
    %v369 = vmul.f32 %v203, 0.00390625
    %v370 = vmul.f32 %v206, 0.00390625
    %v371 = vmul.f32 %v209, 0.00390625
    %v372 = vmul.f32 %v212, 0.00390625
    %v373 = vmul.f32 %v215, 0.00390625
    %v374 = vmul.f32 %v218, 0.00390625
    %v375 = vmul.f32 %v221, 0.00390625
    %v376 = vmul.f32 %v224, 0.00390625
    %v377 = vmul.f32 %v227, 0.00390625
    %v378 = vmul.f32 %v230, 0.00390625
    %v379 = vmul.f32 %v233, 0.00390625
    %v380 = vmul.f32 %v236, 0.00390625
    %v381 = vmul.f32 %v239, 0.00390625
    %v382 = vmul.f32 %v242, 0.00390625
    %v383 = vmul.f32 %v245, 0.00390625
    %v384 = vmul.f32 %v248, 0.00390625
    %v385 = vmul.f32 %v251, 0.00390625
    %v386 = vmul.f32 %v254, 0.00390625
    %v387 = vmul.f32 %v257, 0.00390625
    %v388 = vmul.f32 %v260, 0.00390625
    %v389 = vmul.f32 %v263, 0.00390625
    %v390 = vmul.f32 %v266, 0.00390625
    %v391 = vmul.f32 %v269, 0.00390625
    %v392 = vmul.f32 %v272, 0.00390625
    %v393 = vmul.f32 %v275, 0.00390625
    %v394 = vmul.f32 %v278, 0.00390625
    %v395 = vmul.f32 %v281, 0.00390625
    %v396 = vmul.f32 %v284, 0.00390625
    %v397 = vmul.f32 %v287, 0.00390625
    %v398 = vmul.f32 %v290, 0.00390625
    %v399 = vmul.f32 %v293, 0.00390625
    %v400 = vmul.f32 %v296, 0.00390625
    %v401 = vmul.f32 %v299, 0.00390625
    %v402 = vmul.f32 %v302, 0.00390625
    %v403 = vmul.f32 %v305, 0.00390625
    %v404 = vmul.f32 %v308, 0.00390625
    %v405 = vmul.f32 %v311, 0.00390625
    %v406 = vmul.f32 %v314, 0.00390625
    %v407 = vmul.f32 %v317, 0.00390625
    %v408 = vmul.f32 %v320, 0.00390625
    %v409 = vmul.f32 %v323, 0.00390625
    %v410 = vmul.f32 %v326, 0.00390625
    %v411 = vmul.f32 %v329, 0.00390625
    %v412 = vmul.f32 %v332, 0.00390625
    %v413 = vmul.f32 %v335, 0.00390625
    %v414 = vmul.f32 %v338, 0.00390625
    %v415 = vmul.f32 %v341, 0.00390625
    %v416 = vmul.f32 %v344, 0.00390625
    %v417 = vmul.f32 %v347, 0.00390625
    %v418 = vmul.f32 %v350, 0.00390625
    %v419 = vmul.f32 %v353, 0.00390625
    %v420 = vmul.f32 %v356, 0.00390625
    %v421 = vld [vmem:[%s1] sm:$0xff]
    %v422 = vld [vmem:[%s1 + $0x8] sm:$0xff]
    %v423 = vld [vmem:[%s1 + $0x10] sm:$0xff]
    %v424 = vld [vmem:[%s1 + $0x18] sm:$0xff]
    %v425 = vld [vmem:[%s1 + $0x20] sm:$0xff]
    %v426 = vld [vmem:[%s1 + $0x28] sm:$0xff]
    %v427 = vld [vmem:[%s1 + $0x30] sm:$0xff]
    %v428 = vld [vmem:[%s1 + $0x38] sm:$0xff]
    %v429 = vld [vmem:[%s2] sm:$0x1]
    %v431 = vperm.slane %v429, 0
    %v497 = vlaneseq
    %v498 = vand.u32 %v497, 127
    %v499 = vperm.slane %v357, %v498
    %v500 = vadd.s32 %v498, 4294967288
    %v501 = vperm.slane %v358, %v500
    %vm502 = vcmask 130112
    %v503 = vsel %vm502, %v501, %v499
    %v504 = vadd.s32 %v498, 4294967280
    %v505 = vperm.slane %v359, %v504
    %vm506 = vcmask 195712
    %v507 = vsel %vm506, %v505, %v503
    %v508 = vadd.s32 %v498, 4294967272
    %v509 = vperm.slane %v360, %v508
    %vm510 = vcmask 261312
    %v511 = vsel %vm510, %v509, %v507
    %v512 = vadd.s32 %v498, 4294967264
    %v513 = vperm.slane %v361, %v512
    %vm514 = vcmask 326912
    %v515 = vsel %vm514, %v513, %v511
    %v516 = vadd.s32 %v498, 4294967256
    %v517 = vperm.slane %v362, %v516
    %vm518 = vcmask 392512
    %v519 = vsel %vm518, %v517, %v515
    %v520 = vadd.s32 %v498, 4294967248
    %v521 = vperm.slane %v363, %v520
    %vm522 = vcmask 458112
    %v523 = vsel %vm522, %v521, %v519
    %v524 = vadd.s32 %v498, 4294967240
    %v525 = vperm.slane %v364, %v524
    %vm526 = vcmask 523712
    %v527 = vsel %vm526, %v525, %v523
    %v528 = vperm.slane %v365, %v498
    %v529 = vperm.slane %v366, %v500
    %v530 = vsel %vm502, %v529, %v528
    %v531 = vperm.slane %v367, %v504
    %v532 = vsel %vm506, %v531, %v530
    %v533 = vperm.slane %v368, %v508
    %v534 = vsel %vm510, %v533, %v532
    %v535 = vperm.slane %v369, %v512
    %v536 = vsel %vm514, %v535, %v534
    %v537 = vperm.slane %v370, %v516
    %v538 = vsel %vm518, %v537, %v536
    %v539 = vperm.slane %v371, %v520
    %v540 = vsel %vm522, %v539, %v538
    %v541 = vperm.slane %v372, %v524
    %v542 = vsel %vm526, %v541, %v540
    %v543 = vperm.slane %v373, %v498
    %v544 = vperm.slane %v374, %v500
    %v545 = vsel %vm502, %v544, %v543
    %v546 = vperm.slane %v375, %v504
    %v547 = vsel %vm506, %v546, %v545
    %v548 = vperm.slane %v376, %v508
    %v549 = vsel %vm510, %v548, %v547
    %v550 = vperm.slane %v377, %v512
    %v551 = vsel %vm514, %v550, %v549
    %v552 = vperm.slane %v378, %v516
    %v553 = vsel %vm518, %v552, %v551
    %v554 = vperm.slane %v379, %v520
    %v555 = vsel %vm522, %v554, %v553
    %v556 = vperm.slane %v380, %v524
    %v557 = vsel %vm526, %v556, %v555
    %v558 = vperm.slane %v381, %v498
    %v559 = vperm.slane %v382, %v500
    %v560 = vsel %vm502, %v559, %v558
    %v561 = vperm.slane %v383, %v504
    %v562 = vsel %vm506, %v561, %v560
    %v563 = vperm.slane %v384, %v508
    %v564 = vsel %vm510, %v563, %v562
    %v565 = vperm.slane %v385, %v512
    %v566 = vsel %vm514, %v565, %v564
    %v567 = vperm.slane %v386, %v516
    %v568 = vsel %vm518, %v567, %v566
    %v569 = vperm.slane %v387, %v520
    %v570 = vsel %vm522, %v569, %v568
    %v571 = vperm.slane %v388, %v524
    %v572 = vsel %vm526, %v571, %v570
    %v573 = vperm.slane %v389, %v498
    %v574 = vperm.slane %v390, %v500
    %v575 = vsel %vm502, %v574, %v573
    %v576 = vperm.slane %v391, %v504
    %v577 = vsel %vm506, %v576, %v575
    %v578 = vperm.slane %v392, %v508
    %v579 = vsel %vm510, %v578, %v577
    %v580 = vperm.slane %v393, %v512
    %v581 = vsel %vm514, %v580, %v579
    %v582 = vperm.slane %v394, %v516
    %v583 = vsel %vm518, %v582, %v581
    %v584 = vperm.slane %v395, %v520
    %v585 = vsel %vm522, %v584, %v583
    %v586 = vperm.slane %v396, %v524
    %v587 = vsel %vm526, %v586, %v585
    %v588 = vperm.slane %v397, %v498
    %v589 = vperm.slane %v398, %v500
    %v590 = vsel %vm502, %v589, %v588
    %v591 = vperm.slane %v399, %v504
    %v592 = vsel %vm506, %v591, %v590
    %v593 = vperm.slane %v400, %v508
    %v594 = vsel %vm510, %v593, %v592
    %v595 = vperm.slane %v401, %v512
    %v596 = vsel %vm514, %v595, %v594
    %v597 = vperm.slane %v402, %v516
    %v598 = vsel %vm518, %v597, %v596
    %v599 = vperm.slane %v403, %v520
    %v600 = vsel %vm522, %v599, %v598
    %v601 = vperm.slane %v404, %v524
    %v602 = vsel %vm526, %v601, %v600
    %v603 = vperm.slane %v405, %v498
    %v604 = vperm.slane %v406, %v500
    %v605 = vsel %vm502, %v604, %v603
    %v606 = vperm.slane %v407, %v504
    %v607 = vsel %vm506, %v606, %v605
    %v608 = vperm.slane %v408, %v508
    %v609 = vsel %vm510, %v608, %v607
    %v610 = vperm.slane %v409, %v512
    %v611 = vsel %vm514, %v610, %v609
    %v612 = vperm.slane %v410, %v516
    %v613 = vsel %vm518, %v612, %v611
    %v614 = vperm.slane %v411, %v520
    %v615 = vsel %vm522, %v614, %v613
    %v616 = vperm.slane %v412, %v524
    %v617 = vsel %vm526, %v616, %v615
    %v618 = vperm.slane %v413, %v498
    %v619 = vperm.slane %v414, %v500
    %v620 = vsel %vm502, %v619, %v618
    %v621 = vperm.slane %v415, %v504
    %v622 = vsel %vm506, %v621, %v620
    %v623 = vperm.slane %v416, %v508
    %v624 = vsel %vm510, %v623, %v622
    %v625 = vperm.slane %v417, %v512
    %v626 = vsel %vm514, %v625, %v624
    %v627 = vperm.slane %v418, %v516
    %v628 = vsel %vm518, %v627, %v626
    %v629 = vperm.slane %v419, %v520
    %v630 = vsel %vm522, %v629, %v628
    %v631 = vperm.slane %v420, %v524
    %v632 = vsel %vm526, %v631, %v630
    %vm633 = vcmask 1041409
    %v634 = vsel %vm633, %v542, %v527
    %vm635 = vcmask 1042434
    %v636 = vsel %vm635, %v557, %v634
    %vm637 = vcmask 1043459
    %v638 = vsel %vm637, %v572, %v636
    %vm639 = vcmask 1044484
    %v640 = vsel %vm639, %v587, %v638
    %vm641 = vcmask 1045509
    %v642 = vsel %vm641, %v602, %v640
    %vm643 = vcmask 1046534
    %v644 = vsel %vm643, %v617, %v642
    %vm645 = vcmask 1047559
    %v646 = vsel %vm645, %v632, %v644
    %vm647 = vcmask 523264
    %v648 = vsel %vm647, %v646, 0
    %650 = vmatpush.msra.mxu0 0.0
    %651 = vmatpush.msra.mxu0 0.0
    %652 = vmatpush.msra.mxu0 0.0
    %653 = vmatpush.msra.mxu0 0.0
    %654 = vmatpush.msra.mxu0 0.0
    %655 = vmatpush.msra.mxu0 0.0
    %656 = vmatpush.msra.mxu0 0.0
    %657 = vmatpush.msra.mxu0 0.0
    %658 = vmatpush.msra.mxu0 %v428
    %659 = vmatpush.msra.mxu0 %v427
    %660 = vmatpush.msra.mxu0 %v426
    %661 = vmatpush.msra.mxu0 %v425
    %662 = vmatpush.msra.mxu0 %v424
    %663 = vmatpush.msra.mxu0 %v423
    %664 = vmatpush.msra.mxu0 %v422
    %665 = vmatpush.msra.mxu0 %v421
    %666 = vmatmul.f32.gmra.mxu0 %v648
    %v667 = vpop.f32.mrf.mxu0
    %v668 = vadd.f32 %v431, %v667
    %669 = vdwg.mxu0
    %v670 = vmax.f32 %v668, 0.0
    %v671 = vld [vmem:[%s3] sm:$0xf]
    %v672 = vld [vmem:[%s4] sm:$0x1]
    %v674 = vperm.slane %v672, 0
    %vm676 = vcmask 31744
    %v678 = vsel %vm676, %v670, 0
    %vm680 = vcmask 1043456
    %v682 = vsel %vm680, %v671, 0
    %684 = vmatpush.msra.mxu0 0.0
    %685 = vmatpush.msra.mxu0 0.0
    %686 = vmatpush.msra.mxu0 0.0
    %687 = vmatpush.msra.mxu0 0.0
    %688 = vmatpush.msra.mxu0 0.0
    %689 = vmatpush.msra.mxu0 0.0
    %690 = vmatpush.msra.mxu0 0.0
    %691 = vmatpush.msra.mxu0 0.0
    %692 = vmatpush.msra.mxu0 0.0
    %693 = vmatpush.msra.mxu0 0.0
    %694 = vmatpush.msra.mxu0 0.0
    %695 = vmatpush.msra.mxu0 0.0
    %696 = vmatpush.msra.mxu0 0.0
    %697 = vmatpush.msra.mxu0 0.0
    %698 = vmatpush.msra.mxu0 0.0
    %699 = vmatpush.msra.mxu0 %v682
    %700 = vmatmul.f32.gmra.mxu0 %v678
    %v701 = vpop.f32.mrf.mxu0
    %v702 = vadd.f32 %v674, %v701
    %703 = vdwg.mxu0
    %v704 = vxor.u32 %v702, 2147483648
    %v705 = vmul.f32 %v704, 1.442695
    %v706 = vpow.pop %v705
    %v707 = vadd.f32 %v706, 1.0
    %v708 = vrcp.pop %v707
    %v709 = vmul.f32 %v707, %v708
    %v710 = vsub.f32 1.0, %v709
    %v711 = vmul.f32 %v708, %v710
    %v712 = vadd.f32 %v708, %v711
    %vm713 = vweird.f32 %v707
    %vm714 = vweird.f32 %v708
    %vm715 = vmor %vm713, %vm714
    %v716 = vsel %vm715, %v708, %v712
    %v717 = vand.u32 2147483647, %v707
    %vm718 = vcmp.eq.f32.partialorder %v717, 8.507059e+37
    %v719 = vand.u32 %v707, 2147483648
    %v720 = vor.u32 1.1754944e-38, %v719
    %v721 = vsel %vm718, %v720, %v716
    %v722 = vmul.f32 1.0, %v721
    %v723 = vperm.slane %v722, 0
    %v724 = vlaneseq
    %v725 = vshrl.u32 %v724, 7
    %727 = vset.pattern.permute.xlu0 %v725
    %728 = vperm.xlu0 %727, %v723
    %v729 = vpop.permute.xlu0 %728
    %v730 = vlaneseq
    %v731 = vshrl.u32 %v730, 7
    %v732 = vadd.s32 %v731, 8
    %733 = vset.pattern.permute.xlu0 %v732
    %734 = vperm.xlu0 %733, %v723
    %v735 = vpop.permute.xlu0 %734
    %v736 = vlaneseq
    %v737 = vshrl.u32 %v736, 7
    %v738 = vadd.s32 %v737, 16
    %739 = vset.pattern.permute.xlu0 %v738
    %740 = vperm.xlu0 %739, %v723
    %v741 = vpop.permute.xlu0 %740
    %v742 = vlaneseq
    %v743 = vshrl.u32 %v742, 7
    %v744 = vadd.s32 %v743, 24
    %745 = vset.pattern.permute.xlu0 %v744
    %746 = vperm.xlu0 %745, %v723
    %v747 = vpop.permute.xlu0 %746
    %v748 = vlaneseq
    %v749 = vshrl.u32 %v748, 7
    %v750 = vadd.s32 %v749, 32
    %751 = vset.pattern.permute.xlu0 %v750
    %752 = vperm.xlu0 %751, %v723
    %v753 = vpop.permute.xlu0 %752
    %v754 = vlaneseq
    %v755 = vshrl.u32 %v754, 7
    %v756 = vadd.s32 %v755, 40
    %757 = vset.pattern.permute.xlu0 %v756
    %758 = vperm.xlu0 %757, %v723
    %v759 = vpop.permute.xlu0 %758
    %v760 = vlaneseq
    %v761 = vshrl.u32 %v760, 7
    %v762 = vadd.s32 %v761, 48
    %763 = vset.pattern.permute.xlu0 %v762
    %764 = vperm.xlu0 %763, %v723
    %v765 = vpop.permute.xlu0 %764
    %v766 = vlaneseq
    %v767 = vshrl.u32 %v766, 7
    %v768 = vadd.s32 %v767, 56
    %769 = vset.pattern.permute.xlu0 %v768
    %770 = vperm.xlu0 %769, %v723
    %v771 = vpop.permute.xlu0 %770
    %v772 = vperm.slane %v722, 1
    %v773 = vlaneseq
    %v774 = vshrl.u32 %v773, 7
    %776 = vset.pattern.permute.xlu0 %v774
    %777 = vperm.xlu0 %776, %v772
    %v778 = vpop.permute.xlu0 %777
    %v779 = vlaneseq
    %v780 = vshrl.u32 %v779, 7
    %v781 = vadd.s32 %v780, 8
    %782 = vset.pattern.permute.xlu0 %v781
    %783 = vperm.xlu0 %782, %v772
    %v784 = vpop.permute.xlu0 %783
    %v785 = vlaneseq
    %v786 = vshrl.u32 %v785, 7
    %v787 = vadd.s32 %v786, 16
    %788 = vset.pattern.permute.xlu0 %v787
    %789 = vperm.xlu0 %788, %v772
    %v790 = vpop.permute.xlu0 %789
    %v791 = vlaneseq
    %v792 = vshrl.u32 %v791, 7
    %v793 = vadd.s32 %v792, 24
    %794 = vset.pattern.permute.xlu0 %v793
    %795 = vperm.xlu0 %794, %v772
    %v796 = vpop.permute.xlu0 %795
    %v797 = vlaneseq
    %v798 = vshrl.u32 %v797, 7
    %v799 = vadd.s32 %v798, 32
    %800 = vset.pattern.permute.xlu0 %v799
    %801 = vperm.xlu0 %800, %v772
    %v802 = vpop.permute.xlu0 %801
    %v803 = vlaneseq
    %v804 = vshrl.u32 %v803, 7
    %v805 = vadd.s32 %v804, 40
    %806 = vset.pattern.permute.xlu0 %v805
    %807 = vperm.xlu0 %806, %v772
    %v808 = vpop.permute.xlu0 %807
    %v809 = vlaneseq
    %v810 = vshrl.u32 %v809, 7
    %v811 = vadd.s32 %v810, 48
    %812 = vset.pattern.permute.xlu0 %v811
    %813 = vperm.xlu0 %812, %v772
    %v814 = vpop.permute.xlu0 %813
    %v815 = vlaneseq
    %v816 = vshrl.u32 %v815, 7
    %v817 = vadd.s32 %v816, 56
    %818 = vset.pattern.permute.xlu0 %v817
    %819 = vperm.xlu0 %818, %v772
    %v820 = vpop.permute.xlu0 %819
    %v821 = vperm.slane %v722, 2
    %v822 = vlaneseq
    %v823 = vshrl.u32 %v822, 7
    %825 = vset.pattern.permute.xlu0 %v823
    %826 = vperm.xlu0 %825, %v821
    %v827 = vpop.permute.xlu0 %826
    %v828 = vlaneseq
    %v829 = vshrl.u32 %v828, 7
    %v830 = vadd.s32 %v829, 8
    %831 = vset.pattern.permute.xlu0 %v830
    %832 = vperm.xlu0 %831, %v821
    %v833 = vpop.permute.xlu0 %832
    %v834 = vlaneseq
    %v835 = vshrl.u32 %v834, 7
    %v836 = vadd.s32 %v835, 16
    %837 = vset.pattern.permute.xlu0 %v836
    %838 = vperm.xlu0 %837, %v821
    %v839 = vpop.permute.xlu0 %838
    %v840 = vlaneseq
    %v841 = vshrl.u32 %v840, 7
    %v842 = vadd.s32 %v841, 24
    %843 = vset.pattern.permute.xlu0 %v842
    %844 = vperm.xlu0 %843, %v821
    %v845 = vpop.permute.xlu0 %844
    %v846 = vlaneseq
    %v847 = vshrl.u32 %v846, 7
    %v848 = vadd.s32 %v847, 32
    %849 = vset.pattern.permute.xlu0 %v848
    %850 = vperm.xlu0 %849, %v821
    %v851 = vpop.permute.xlu0 %850
    %v852 = vlaneseq
    %v853 = vshrl.u32 %v852, 7
    %v854 = vadd.s32 %v853, 40
    %855 = vset.pattern.permute.xlu0 %v854
    %856 = vperm.xlu0 %855, %v821
    %v857 = vpop.permute.xlu0 %856
    %v858 = vlaneseq
    %v859 = vshrl.u32 %v858, 7
    %v860 = vadd.s32 %v859, 48
    %861 = vset.pattern.permute.xlu0 %v860
    %862 = vperm.xlu0 %861, %v821
    %v863 = vpop.permute.xlu0 %862
    %v864 = vlaneseq
    %v865 = vshrl.u32 %v864, 7
    %v866 = vadd.s32 %v865, 56
    %867 = vset.pattern.permute.xlu0 %v866
    %868 = vperm.xlu0 %867, %v821
    %v869 = vpop.permute.xlu0 %868
    %v870 = vperm.slane %v722, 3
    %v871 = vlaneseq
    %v872 = vshrl.u32 %v871, 7
    %874 = vset.pattern.permute.xlu0 %v872
    %875 = vperm.xlu0 %874, %v870
    %v876 = vpop.permute.xlu0 %875
    %v877 = vlaneseq
    %v878 = vshrl.u32 %v877, 7
    %v879 = vadd.s32 %v878, 8
    %880 = vset.pattern.permute.xlu0 %v879
    %881 = vperm.xlu0 %880, %v870
    %v882 = vpop.permute.xlu0 %881
    %v883 = vlaneseq
    %v884 = vshrl.u32 %v883, 7
    %v885 = vadd.s32 %v884, 16
    %886 = vset.pattern.permute.xlu0 %v885
    %887 = vperm.xlu0 %886, %v870
    %v888 = vpop.permute.xlu0 %887
    %v889 = vlaneseq
    %v890 = vshrl.u32 %v889, 7
    %v891 = vadd.s32 %v890, 24
    %892 = vset.pattern.permute.xlu0 %v891
    %893 = vperm.xlu0 %892, %v870
    %v894 = vpop.permute.xlu0 %893
    %v895 = vlaneseq
    %v896 = vshrl.u32 %v895, 7
    %v897 = vadd.s32 %v896, 32
    %898 = vset.pattern.permute.xlu0 %v897
    %899 = vperm.xlu0 %898, %v870
    %v900 = vpop.permute.xlu0 %899
    %v901 = vlaneseq
    %v902 = vshrl.u32 %v901, 7
    %v903 = vadd.s32 %v902, 40
    %904 = vset.pattern.permute.xlu0 %v903
    %905 = vperm.xlu0 %904, %v870
    %v906 = vpop.permute.xlu0 %905
    %v907 = vlaneseq
    %v908 = vshrl.u32 %v907, 7
    %v909 = vadd.s32 %v908, 48
    %910 = vset.pattern.permute.xlu0 %v909
    %911 = vperm.xlu0 %910, %v870
    %v912 = vpop.permute.xlu0 %911
    %v913 = vlaneseq
    %v914 = vshrl.u32 %v913, 7
    %v915 = vadd.s32 %v914, 56
    %916 = vset.pattern.permute.xlu0 %v915
    %917 = vperm.xlu0 %916, %v870
    %v918 = vpop.permute.xlu0 %917
    %v919 = vperm.slane %v722, 4
    %v920 = vlaneseq
    %v921 = vshrl.u32 %v920, 7
    %923 = vset.pattern.permute.xlu0 %v921
    %924 = vperm.xlu0 %923, %v919
    %v925 = vpop.permute.xlu0 %924
    %v926 = vlaneseq
    %v927 = vshrl.u32 %v926, 7
    %v928 = vadd.s32 %v927, 8
    %929 = vset.pattern.permute.xlu0 %v928
    %930 = vperm.xlu0 %929, %v919
    %v931 = vpop.permute.xlu0 %930
    %v932 = vlaneseq
    %v933 = vshrl.u32 %v932, 7
    %v934 = vadd.s32 %v933, 16
    %935 = vset.pattern.permute.xlu0 %v934
    %936 = vperm.xlu0 %935, %v919
    %v937 = vpop.permute.xlu0 %936
    %v938 = vlaneseq
    %v939 = vshrl.u32 %v938, 7
    %v940 = vadd.s32 %v939, 24
    %941 = vset.pattern.permute.xlu0 %v940
    %942 = vperm.xlu0 %941, %v919
    %v943 = vpop.permute.xlu0 %942
    %v944 = vlaneseq
    %v945 = vshrl.u32 %v944, 7
    %v946 = vadd.s32 %v945, 32
    %947 = vset.pattern.permute.xlu0 %v946
    %948 = vperm.xlu0 %947, %v919
    %v949 = vpop.permute.xlu0 %948
    %v950 = vlaneseq
    %v951 = vshrl.u32 %v950, 7
    %v952 = vadd.s32 %v951, 40
    %953 = vset.pattern.permute.xlu0 %v952
    %954 = vperm.xlu0 %953, %v919
    %v955 = vpop.permute.xlu0 %954
    %v956 = vlaneseq
    %v957 = vshrl.u32 %v956, 7
    %v958 = vadd.s32 %v957, 48
    %959 = vset.pattern.permute.xlu0 %v958
    %960 = vperm.xlu0 %959, %v919
    %v961 = vpop.permute.xlu0 %960
    %v962 = vlaneseq
    %v963 = vshrl.u32 %v962, 7
    %v964 = vadd.s32 %v963, 56
    %965 = vset.pattern.permute.xlu0 %v964
    %966 = vperm.xlu0 %965, %v919
    %v967 = vpop.permute.xlu0 %966
    %v968 = vperm.slane %v722, 5
    %v969 = vlaneseq
    %v970 = vshrl.u32 %v969, 7
    %972 = vset.pattern.permute.xlu0 %v970
    %973 = vperm.xlu0 %972, %v968
    %v974 = vpop.permute.xlu0 %973
    %v975 = vlaneseq
    %v976 = vshrl.u32 %v975, 7
    %v977 = vadd.s32 %v976, 8
    %978 = vset.pattern.permute.xlu0 %v977
    %979 = vperm.xlu0 %978, %v968
    %v980 = vpop.permute.xlu0 %979
    %v981 = vlaneseq
    %v982 = vshrl.u32 %v981, 7
    %v983 = vadd.s32 %v982, 16
    %984 = vset.pattern.permute.xlu0 %v983
    %985 = vperm.xlu0 %984, %v968
    %v986 = vpop.permute.xlu0 %985
    %v987 = vlaneseq
    %v988 = vshrl.u32 %v987, 7
    %v989 = vadd.s32 %v988, 24
    %990 = vset.pattern.permute.xlu0 %v989
    %991 = vperm.xlu0 %990, %v968
    %v992 = vpop.permute.xlu0 %991
    %v993 = vlaneseq
    %v994 = vshrl.u32 %v993, 7
    %v995 = vadd.s32 %v994, 32
    %996 = vset.pattern.permute.xlu0 %v995
    %997 = vperm.xlu0 %996, %v968
    %v998 = vpop.permute.xlu0 %997
    %v999 = vlaneseq
    %v1000 = vshrl.u32 %v999, 7
    %v1001 = vadd.s32 %v1000, 40
    %1002 = vset.pattern.permute.xlu0 %v1001
    %1003 = vperm.xlu0 %1002, %v968
    %v1004 = vpop.permute.xlu0 %1003
    %v1005 = vlaneseq
    %v1006 = vshrl.u32 %v1005, 7
    %v1007 = vadd.s32 %v1006, 48
    %1008 = vset.pattern.permute.xlu0 %v1007
    %1009 = vperm.xlu0 %1008, %v968
    %v1010 = vpop.permute.xlu0 %1009
    %v1011 = vlaneseq
    %v1012 = vshrl.u32 %v1011, 7
    %v1013 = vadd.s32 %v1012, 56
    %1014 = vset.pattern.permute.xlu0 %v1013
    %1015 = vperm.xlu0 %1014, %v968
    %v1016 = vpop.permute.xlu0 %1015
    %v1017 = vperm.slane %v722, 6
    %v1018 = vlaneseq
    %v1019 = vshrl.u32 %v1018, 7
    %1021 = vset.pattern.permute.xlu0 %v1019
    %1022 = vperm.xlu0 %1021, %v1017
    %v1023 = vpop.permute.xlu0 %1022
    %v1024 = vlaneseq
    %v1025 = vshrl.u32 %v1024, 7
    %v1026 = vadd.s32 %v1025, 8
    %1027 = vset.pattern.permute.xlu0 %v1026
    %1028 = vperm.xlu0 %1027, %v1017
    %v1029 = vpop.permute.xlu0 %1028
    %v1030 = vlaneseq
    %v1031 = vshrl.u32 %v1030, 7
    %v1032 = vadd.s32 %v1031, 16
    %1033 = vset.pattern.permute.xlu0 %v1032
    %1034 = vperm.xlu0 %1033, %v1017
    %v1035 = vpop.permute.xlu0 %1034
    %v1036 = vlaneseq
    %v1037 = vshrl.u32 %v1036, 7
    %v1038 = vadd.s32 %v1037, 24
    %1039 = vset.pattern.permute.xlu0 %v1038
    %1040 = vperm.xlu0 %1039, %v1017
    %v1041 = vpop.permute.xlu0 %1040
    %v1042 = vlaneseq
    %v1043 = vshrl.u32 %v1042, 7
    %v1044 = vadd.s32 %v1043, 32
    %1045 = vset.pattern.permute.xlu0 %v1044
    %1046 = vperm.xlu0 %1045, %v1017
    %v1047 = vpop.permute.xlu0 %1046
    %v1048 = vlaneseq
    %v1049 = vshrl.u32 %v1048, 7
    %v1050 = vadd.s32 %v1049, 40
    %1051 = vset.pattern.permute.xlu0 %v1050
    %1052 = vperm.xlu0 %1051, %v1017
    %v1053 = vpop.permute.xlu0 %1052
    %v1054 = vlaneseq
    %v1055 = vshrl.u32 %v1054, 7
    %v1056 = vadd.s32 %v1055, 48
    %1057 = vset.pattern.permute.xlu0 %v1056
    %1058 = vperm.xlu0 %1057, %v1017
    %v1059 = vpop.permute.xlu0 %1058
    %v1060 = vlaneseq
    %v1061 = vshrl.u32 %v1060, 7
    %v1062 = vadd.s32 %v1061, 56
    %1063 = vset.pattern.permute.xlu0 %v1062
    %1064 = vperm.xlu0 %1063, %v1017
    %v1065 = vpop.permute.xlu0 %1064
    %v1066 = vperm.slane %v722, 7
    %v1067 = vlaneseq
    %v1068 = vshrl.u32 %v1067, 7
    %1070 = vset.pattern.permute.xlu0 %v1068
    %1071 = vperm.xlu0 %1070, %v1066
    %v1072 = vpop.permute.xlu0 %1071
    %v1073 = vlaneseq
    %v1074 = vshrl.u32 %v1073, 7
    %v1075 = vadd.s32 %v1074, 8
    %1076 = vset.pattern.permute.xlu0 %v1075
    %1077 = vperm.xlu0 %1076, %v1066
    %v1078 = vpop.permute.xlu0 %1077
    %v1079 = vlaneseq
    %v1080 = vshrl.u32 %v1079, 7
    %v1081 = vadd.s32 %v1080, 16
    %1082 = vset.pattern.permute.xlu0 %v1081
    %1083 = vperm.xlu0 %1082, %v1066
    %v1084 = vpop.permute.xlu0 %1083
    %v1085 = vlaneseq
    %v1086 = vshrl.u32 %v1085, 7
    %v1087 = vadd.s32 %v1086, 24
    %1088 = vset.pattern.permute.xlu0 %v1087
    %1089 = vperm.xlu0 %1088, %v1066
    %v1090 = vpop.permute.xlu0 %1089
    %v1091 = vlaneseq
    %v1092 = vshrl.u32 %v1091, 7
    %v1093 = vadd.s32 %v1092, 32
    %1094 = vset.pattern.permute.xlu0 %v1093
    %1095 = vperm.xlu0 %1094, %v1066
    %v1096 = vpop.permute.xlu0 %1095
    %v1097 = vlaneseq
    %v1098 = vshrl.u32 %v1097, 7
    %v1099 = vadd.s32 %v1098, 40
    %1100 = vset.pattern.permute.xlu0 %v1099
    %1101 = vperm.xlu0 %1100, %v1066
    %v1102 = vpop.permute.xlu0 %1101
    %v1103 = vlaneseq
    %v1104 = vshrl.u32 %v1103, 7
    %v1105 = vadd.s32 %v1104, 48
    %1106 = vset.pattern.permute.xlu0 %v1105
    %1107 = vperm.xlu0 %1106, %v1066
    %v1108 = vpop.permute.xlu0 %1107
    %v1109 = vlaneseq
    %v1110 = vshrl.u32 %v1109, 7
    %v1111 = vadd.s32 %v1110, 56
    %1112 = vset.pattern.permute.xlu0 %v1111
    %1113 = vperm.xlu0 %1112, %v1066
    %v1114 = vpop.permute.xlu0 %1113
    %v1115 = vmul.f32 %v37, %v729
    %v1116 = vmul.f32 %v38, %v729
    %v1117 = vmul.f32 %v39, %v735
    %v1118 = vmul.f32 %v40, %v735
    %v1119 = vmul.f32 %v41, %v741
    %v1120 = vmul.f32 %v42, %v741
    %v1121 = vmul.f32 %v43, %v747
    %v1122 = vmul.f32 %v44, %v747
    %v1123 = vmul.f32 %v45, %v753
    %v1124 = vmul.f32 %v46, %v753
    %v1125 = vmul.f32 %v47, %v759
    %v1126 = vmul.f32 %v48, %v759
    %v1127 = vmul.f32 %v49, %v765
    %v1128 = vmul.f32 %v50, %v765
    %v1129 = vmul.f32 %v51, %v771
    %v1130 = vmul.f32 %v52, %v771
    %v1131 = vmul.f32 %v53, %v778
    %v1132 = vmul.f32 %v54, %v778
    %v1133 = vmul.f32 %v55, %v784
    %v1134 = vmul.f32 %v56, %v784
    %v1135 = vmul.f32 %v57, %v790
    %v1136 = vmul.f32 %v58, %v790
    %v1137 = vmul.f32 %v59, %v796
    %v1138 = vmul.f32 %v60, %v796
    %v1139 = vmul.f32 %v61, %v802
    %v1140 = vmul.f32 %v62, %v802
    %v1141 = vmul.f32 %v63, %v808
    %v1142 = vmul.f32 %v64, %v808
    %v1143 = vmul.f32 %v65, %v814
    %v1144 = vmul.f32 %v66, %v814
    %v1145 = vmul.f32 %v67, %v820
    %v1146 = vmul.f32 %v68, %v820
    %v1147 = vmul.f32 %v69, %v827
    %v1148 = vmul.f32 %v70, %v827
    %v1149 = vmul.f32 %v71, %v833
    %v1150 = vmul.f32 %v72, %v833
    %v1151 = vmul.f32 %v73, %v839
    %v1152 = vmul.f32 %v74, %v839
    %v1153 = vmul.f32 %v75, %v845
    %v1154 = vmul.f32 %v76, %v845
    %v1155 = vmul.f32 %v77, %v851
    %v1156 = vmul.f32 %v78, %v851
    %v1157 = vmul.f32 %v79, %v857
    %v1158 = vmul.f32 %v80, %v857
    %v1159 = vmul.f32 %v81, %v863
    %v1160 = vmul.f32 %v82, %v863
    %v1161 = vmul.f32 %v83, %v869
    %v1162 = vmul.f32 %v84, %v869
    %v1163 = vmul.f32 %v85, %v876
    %v1164 = vmul.f32 %v86, %v876
    %v1165 = vmul.f32 %v87, %v882
    %v1166 = vmul.f32 %v88, %v882
    %v1167 = vmul.f32 %v89, %v888
    %v1168 = vmul.f32 %v90, %v888
    %v1169 = vmul.f32 %v91, %v894
    %v1170 = vmul.f32 %v92, %v894
    %v1171 = vmul.f32 %v93, %v900
    %v1172 = vmul.f32 %v94, %v900
    %v1173 = vmul.f32 %v95, %v906
    %v1174 = vmul.f32 %v96, %v906
    %v1175 = vmul.f32 %v97, %v912
    %v1176 = vmul.f32 %v98, %v912
    %v1177 = vmul.f32 %v99, %v918
    %v1178 = vmul.f32 %v100, %v918
    %v1179 = vmul.f32 %v101, %v925
    %v1180 = vmul.f32 %v102, %v925
    %v1181 = vmul.f32 %v103, %v931
    %v1182 = vmul.f32 %v104, %v931
    %v1183 = vmul.f32 %v105, %v937
    %v1184 = vmul.f32 %v106, %v937
    %v1185 = vmul.f32 %v107, %v943
    %v1186 = vmul.f32 %v108, %v943
    %v1187 = vmul.f32 %v109, %v949
    %v1188 = vmul.f32 %v110, %v949
    %v1189 = vmul.f32 %v111, %v955
    %v1190 = vmul.f32 %v112, %v955
    %v1191 = vmul.f32 %v113, %v961
    %v1192 = vmul.f32 %v114, %v961
    %v1193 = vmul.f32 %v115, %v967
    %v1194 = vmul.f32 %v116, %v967
    %v1195 = vmul.f32 %v117, %v974
    %v1196 = vmul.f32 %v118, %v974
    %v1197 = vmul.f32 %v119, %v980
    %v1198 = vmul.f32 %v120, %v980
    %v1199 = vmul.f32 %v121, %v986
    %v1200 = vmul.f32 %v122, %v986
    %v1201 = vmul.f32 %v123, %v992
    %v1202 = vmul.f32 %v124, %v992
    %v1203 = vmul.f32 %v125, %v998
    %v1204 = vmul.f32 %v126, %v998
    %v1205 = vmul.f32 %v127, %v1004
    %v1206 = vmul.f32 %v128, %v1004
    %v1207 = vmul.f32 %v129, %v1010
    %v1208 = vmul.f32 %v130, %v1010
    %v1209 = vmul.f32 %v131, %v1016
    %v1210 = vmul.f32 %v132, %v1016
    %v1211 = vmul.f32 %v133, %v1023
    %v1212 = vmul.f32 %v134, %v1023
    %v1213 = vmul.f32 %v135, %v1029
    %v1214 = vmul.f32 %v136, %v1029
    %v1215 = vmul.f32 %v137, %v1035
    %v1216 = vmul.f32 %v138, %v1035
    %v1217 = vmul.f32 %v139, %v1041
    %v1218 = vmul.f32 %v140, %v1041
    %v1219 = vmul.f32 %v141, %v1047
    %v1220 = vmul.f32 %v142, %v1047
    %v1221 = vmul.f32 %v143, %v1053
    %v1222 = vmul.f32 %v144, %v1053
    %v1223 = vmul.f32 %v145, %v1059
    %v1224 = vmul.f32 %v146, %v1059
    %v1225 = vmul.f32 %v147, %v1065
    %v1226 = vmul.f32 %v148, %v1065
    %v1227 = vmul.f32 %v149, %v1072
    %v1228 = vmul.f32 %v150, %v1072
    %v1229 = vmul.f32 %v151, %v1078
    %v1230 = vmul.f32 %v152, %v1078
    %v1231 = vmul.f32 %v153, %v1084
    %v1232 = vmul.f32 %v154, %v1084
    %v1233 = vmul.f32 %v155, %v1090
    %v1234 = vmul.f32 %v156, %v1090
    %v1235 = vmul.f32 %v157, %v1096
    %v1236 = vmul.f32 %v158, %v1096
    %v1237 = vmul.f32 %v159, %v1102
    %v1238 = vmul.f32 %v160, %v1102
    %v1239 = vmul.f32 %v161, %v1108
    %v1240 = vmul.f32 %v162, %v1108
    %v1241 = vmul.f32 %v163, %v1114
    %v1242 = vmul.f32 %v164, %v1114
    %1243 = vst [vmem:[#allocation5] sm:$0xff] %v1115
    %1244 = vst [vmem:[#allocation5 + $0x8] sm:$0xff] %v1116
    %1245 = vst [vmem:[#allocation5 + $0x10] sm:$0xff] %v1117
    %1246 = vst [vmem:[#allocation5 + $0x18] sm:$0xff] %v1118
    %1247 = vst [vmem:[#allocation5 + $0x20] sm:$0xff] %v1119
    %1248 = vst [vmem:[#allocation5 + $0x28] sm:$0xff] %v1120
    %1249 = vst [vmem:[#allocation5 + $0x30] sm:$0xff] %v1121
    %1250 = vst [vmem:[#allocation5 + $0x38] sm:$0xff] %v1122
    %1251 = vst [vmem:[#allocation5 + $0x40] sm:$0xff] %v1123
    %1252 = vst [vmem:[#allocation5 + $0x48] sm:$0xff] %v1124
    %1253 = vst [vmem:[#allocation5 + $0x50] sm:$0xff] %v1125
    %1254 = vst [vmem:[#allocation5 + $0x58] sm:$0xff] %v1126
    %1255 = vst [vmem:[#allocation5 + $0x60] sm:$0xff] %v1127
    %1256 = vst [vmem:[#allocation5 + $0x68] sm:$0xff] %v1128
    %1257 = vst [vmem:[#allocation5 + $0x70] sm:$0xff] %v1129
    %1258 = vst [vmem:[#allocation5 + $0x78] sm:$0xff] %v1130
    %1259 = vst [vmem:[#allocation5 + $0x80] sm:$0xff] %v1131
    %1260 = vst [vmem:[#allocation5 + $0x88] sm:$0xff] %v1132
    %1261 = vst [vmem:[#allocation5 + $0x90] sm:$0xff] %v1133
    %1262 = vst [vmem:[#allocation5 + $0x98] sm:$0xff] %v1134
    %1263 = vst [vmem:[#allocation5 + $0xa0] sm:$0xff] %v1135
    %1264 = vst [vmem:[#allocation5 + $0xa8] sm:$0xff] %v1136
    %1265 = vst [vmem:[#allocation5 + $0xb0] sm:$0xff] %v1137
    %1266 = vst [vmem:[#allocation5 + $0xb8] sm:$0xff] %v1138
    %1267 = vst [vmem:[#allocation5 + $0xc0] sm:$0xff] %v1139
    %1268 = vst [vmem:[#allocation5 + $0xc8] sm:$0xff] %v1140
    %1269 = vst [vmem:[#allocation5 + $0xd0] sm:$0xff] %v1141
    %1270 = vst [vmem:[#allocation5 + $0xd8] sm:$0xff] %v1142
    %1271 = vst [vmem:[#allocation5 + $0xe0] sm:$0xff] %v1143
    %1272 = vst [vmem:[#allocation5 + $0xe8] sm:$0xff] %v1144
    %1273 = vst [vmem:[#allocation5 + $0xf0] sm:$0xff] %v1145
    %1274 = vst [vmem:[#allocation5 + $0xf8] sm:$0xff] %v1146
    %1275 = vst [vmem:[#allocation5 + $0x100] sm:$0xff] %v1147
    %1276 = vst [vmem:[#allocation5 + $0x108] sm:$0xff] %v1148
    %1277 = vst [vmem:[#allocation5 + $0x110] sm:$0xff] %v1149
    %1278 = vst [vmem:[#allocation5 + $0x118] sm:$0xff] %v1150
    %1279 = vst [vmem:[#allocation5 + $0x120] sm:$0xff] %v1151
    %1280 = vst [vmem:[#allocation5 + $0x128] sm:$0xff] %v1152
    %1281 = vst [vmem:[#allocation5 + $0x130] sm:$0xff] %v1153
    %1282 = vst [vmem:[#allocation5 + $0x138] sm:$0xff] %v1154
    %1283 = vst [vmem:[#allocation5 + $0x140] sm:$0xff] %v1155
    %1284 = vst [vmem:[#allocation5 + $0x148] sm:$0xff] %v1156
    %1285 = vst [vmem:[#allocation5 + $0x150] sm:$0xff] %v1157
    %1286 = vst [vmem:[#allocation5 + $0x158] sm:$0xff] %v1158
    %1287 = vst [vmem:[#allocation5 + $0x160] sm:$0xff] %v1159
    %1288 = vst [vmem:[#allocation5 + $0x168] sm:$0xff] %v1160
    %1289 = vst [vmem:[#allocation5 + $0x170] sm:$0xff] %v1161
    %1290 = vst [vmem:[#allocation5 + $0x178] sm:$0xff] %v1162
    %1291 = vst [vmem:[#allocation5 + $0x180] sm:$0xff] %v1163
    %1292 = vst [vmem:[#allocation5 + $0x188] sm:$0xff] %v1164
    %1293 = vst [vmem:[#allocation5 + $0x190] sm:$0xff] %v1165
    %1294 = vst [vmem:[#allocation5 + $0x198] sm:$0xff] %v1166
    %1295 = vst [vmem:[#allocation5 + $0x1a0] sm:$0xff] %v1167
    %1296 = vst [vmem:[#allocation5 + $0x1a8] sm:$0xff] %v1168
    %1297 = vst [vmem:[#allocation5 + $0x1b0] sm:$0xff] %v1169
    %1298 = vst [vmem:[#allocation5 + $0x1b8] sm:$0xff] %v1170
    %1299 = vst [vmem:[#allocation5 + $0x1c0] sm:$0xff] %v1171
    %1300 = vst [vmem:[#allocation5 + $0x1c8] sm:$0xff] %v1172
    %1301 = vst [vmem:[#allocation5 + $0x1d0] sm:$0xff] %v1173
    %1302 = vst [vmem:[#allocation5 + $0x1d8] sm:$0xff] %v1174
    %1303 = vst [vmem:[#allocation5 + $0x1e0] sm:$0xff] %v1175
    %1304 = vst [vmem:[#allocation5 + $0x1e8] sm:$0xff] %v1176
    %1305 = vst [vmem:[#allocation5 + $0x1f0] sm:$0xff] %v1177
    %1306 = vst [vmem:[#allocation5 + $0x1f8] sm:$0xff] %v1178
    %1307 = vst [vmem:[#allocation5 + $0x200] sm:$0xff] %v1179
    %1308 = vst [vmem:[#allocation5 + $0x208] sm:$0xff] %v1180
    %1309 = vst [vmem:[#allocation5 + $0x210] sm:$0xff] %v1181
    %1310 = vst [vmem:[#allocation5 + $0x218] sm:$0xff] %v1182
    %1311 = vst [vmem:[#allocation5 + $0x220] sm:$0xff] %v1183
    %1312 = vst [vmem:[#allocation5 + $0x228] sm:$0xff] %v1184
    %1313 = vst [vmem:[#allocation5 + $0x230] sm:$0xff] %v1185
    %1314 = vst [vmem:[#allocation5 + $0x238] sm:$0xff] %v1186
    %1315 = vst [vmem:[#allocation5 + $0x240] sm:$0xff] %v1187
    %1316 = vst [vmem:[#allocation5 + $0x248] sm:$0xff] %v1188
    %1317 = vst [vmem:[#allocation5 + $0x250] sm:$0xff] %v1189
    %1318 = vst [vmem:[#allocation5 + $0x258] sm:$0xff] %v1190
    %1319 = vst [vmem:[#allocation5 + $0x260] sm:$0xff] %v1191
    %1320 = vst [vmem:[#allocation5 + $0x268] sm:$0xff] %v1192
    %1321 = vst [vmem:[#allocation5 + $0x270] sm:$0xff] %v1193
    %1322 = vst [vmem:[#allocation5 + $0x278] sm:$0xff] %v1194
    %1323 = vst [vmem:[#allocation5 + $0x280] sm:$0xff] %v1195
    %1324 = vst [vmem:[#allocation5 + $0x288] sm:$0xff] %v1196
    %1325 = vst [vmem:[#allocation5 + $0x290] sm:$0xff] %v1197
    %1326 = vst [vmem:[#allocation5 + $0x298] sm:$0xff] %v1198
    %1327 = vst [vmem:[#allocation5 + $0x2a0] sm:$0xff] %v1199
    %1328 = vst [vmem:[#allocation5 + $0x2a8] sm:$0xff] %v1200
    %1329 = vst [vmem:[#allocation5 + $0x2b0] sm:$0xff] %v1201
    %1330 = vst [vmem:[#allocation5 + $0x2b8] sm:$0xff] %v1202
    %1331 = vst [vmem:[#allocation5 + $0x2c0] sm:$0xff] %v1203
    %1332 = vst [vmem:[#allocation5 + $0x2c8] sm:$0xff] %v1204
    %1333 = vst [vmem:[#allocation5 + $0x2d0] sm:$0xff] %v1205
    %1334 = vst [vmem:[#allocation5 + $0x2d8] sm:$0xff] %v1206
    %1335 = vst [vmem:[#allocation5 + $0x2e0] sm:$0xff] %v1207
    %1336 = vst [vmem:[#allocation5 + $0x2e8] sm:$0xff] %v1208
    %1337 = vst [vmem:[#allocation5 + $0x2f0] sm:$0xff] %v1209
    %1338 = vst [vmem:[#allocation5 + $0x2f8] sm:$0xff] %v1210
    %1339 = vst [vmem:[#allocation5 + $0x300] sm:$0xff] %v1211
    %1340 = vst [vmem:[#allocation5 + $0x308] sm:$0xff] %v1212
    %1341 = vst [vmem:[#allocation5 + $0x310] sm:$0xff] %v1213
    %1342 = vst [vmem:[#allocation5 + $0x318] sm:$0xff] %v1214
    %1343 = vst [vmem:[#allocation5 + $0x320] sm:$0xff] %v1215
    %1344 = vst [vmem:[#allocation5 + $0x328] sm:$0xff] %v1216
    %1345 = vst [vmem:[#allocation5 + $0x330] sm:$0xff] %v1217
    %1346 = vst [vmem:[#allocation5 + $0x338] sm:$0xff] %v1218
    %1347 = vst [vmem:[#allocation5 + $0x340] sm:$0xff] %v1219
    %1348 = vst [vmem:[#allocation5 + $0x348] sm:$0xff] %v1220
    %1349 = vst [vmem:[#allocation5 + $0x350] sm:$0xff] %v1221
    %1350 = vst [vmem:[#allocation5 + $0x358] sm:$0xff] %v1222
    %1351 = vst [vmem:[#allocation5 + $0x360] sm:$0xff] %v1223
    %1352 = vst [vmem:[#allocation5 + $0x368] sm:$0xff] %v1224
    %1353 = vst [vmem:[#allocation5 + $0x370] sm:$0xff] %v1225
    %1354 = vst [vmem:[#allocation5 + $0x378] sm:$0xff] %v1226
    %1355 = vst [vmem:[#allocation5 + $0x380] sm:$0xff] %v1227
    %1356 = vst [vmem:[#allocation5 + $0x388] sm:$0xff] %v1228
    %1357 = vst [vmem:[#allocation5 + $0x390] sm:$0xff] %v1229
    %1358 = vst [vmem:[#allocation5 + $0x398] sm:$0xff] %v1230
    %1359 = vst [vmem:[#allocation5 + $0x3a0] sm:$0xff] %v1231
    %1360 = vst [vmem:[#allocation5 + $0x3a8] sm:$0xff] %v1232
    %1361 = vst [vmem:[#allocation5 + $0x3b0] sm:$0xff] %v1233
    %1362 = vst [vmem:[#allocation5 + $0x3b8] sm:$0xff] %v1234
    %1363 = vst [vmem:[#allocation5 + $0x3c0] sm:$0xff] %v1235
    %1364 = vst [vmem:[#allocation5 + $0x3c8] sm:$0xff] %v1236
    %1365 = vst [vmem:[#allocation5 + $0x3d0] sm:$0xff] %v1237
    %1366 = vst [vmem:[#allocation5 + $0x3d8] sm:$0xff] %v1238
    %1367 = vst [vmem:[#allocation5 + $0x3e0] sm:$0xff] %v1239
    %1368 = vst [vmem:[#allocation5 + $0x3e8] sm:$0xff] %v1240
    %1369 = vst [vmem:[#allocation5 + $0x3f0] sm:$0xff] %v1241
    %1370 = vst [vmem:[#allocation5 + $0x3f8] sm:$0xff] %v1242
    // Predicated region
    $region26: #{tpu_custom_call.1} parent=1 // pred_check
      _
    $region27: #{tpu_custom_call.1} parent=1 // pred_check_branch
      %1372 = sbr.rel (0) target = $region29
    $region28: #{tpu_custom_call.1} parent=1 // pred_region
      %1374 = vsyncadd [#allocation4], 0
      %s1375 = sshll.u32 [#allocation5], 4
      %s1376 = int_to_ptr.vmem [resolvable:$true] %s1375
      %s1377 = sshll.u32 %s5, 4
      %s1378 = int_to_ptr.hbm [resolvable:$true] %s1377
      %1383 = dma.vmem_to_hbm [thread:$0]  %s1376, 16384, %s1378, [#allocation4], 256, 256, 16
    $region29: #{tpu_custom_call.1} parent=1 // pred_fallthru
      _
    // Predicated region
    $region30: #{tpu_custom_call.1} parent=1 // pred_check
      _
    $region31: #{tpu_custom_call.1} parent=1 // pred_check_branch
      %1385 = sbr.rel (0) target = $region33
    $region32: #{tpu_custom_call.1} parent=1 // pred_region
      %1387 = dma.done [#allocation4], 16384
    $region33: #{tpu_custom_call.1} parent=1 // pred_fallthru
      _
    %1388 = vsyncpa [#allocation3], 1
    %1389 = vsyncpa [#allocation4], 1

</llo_original>
